<compile_context>
chip_gen: v7x
topology: tpu7x:2x2x1
jax: 0.10.0
libtpu: 0.0.40
codegen_flags: <defaults>
</compile_context>

<pallas_src>
import math

import jax
import jax.numpy as jnp
from jax import lax
from jax.experimental import pallas as pl
from jax.experimental.pallas import tpu as pltpu

# Configuration mirroring ECOConv(in_channels=16, out_channels=32, kernel_size=1,
# stride=1, bias=True, eval_terms=10, init_iters=50), module in eval() mode.
IN_CHANNELS = 16
OUT_CHANNELS = 32
KERNEL_SIZE = 1
STRIDE = 1
EVAL_TERMS = 10
INIT_ITERS = 50
MAX_CHANNELS = max(OUT_CHANNELS, IN_CHANNELS * STRIDE * STRIDE)

TARGET_LANES = 32768   # lanes streamed per grid step (bf16 I/O -> ~6.3 MiB dbl-buffered)
MAX_BATCH_FOLD = 32    # max images folded into one grid step for small feature maps


def _round_up(n, m):
    return ((n + m - 1) // m) * m


# ----------------------- plain-JAX setup (matches torch __init__) -----------------------

def _l2_normalize(t, axis, eps=1e-12):
    norm = jnp.sqrt(jnp.sum(jnp.abs(t) * jnp.abs(t), axis=axis, keepdims=True))
    return t / (norm + eps)


def _fantastic_one_batch(conv_filter, u0, v0, num_iters):
    """Power iteration; matches fantastic_one_batch(return_vectors=True) -> (v, u)."""
    def body(_, uv):
        u, v = uv
        v = _l2_normalize(jnp.sum(conv_filter * u, axis=2, keepdims=True), axis=1)
        u = _l2_normalize(jnp.sum(conv_filter * v, axis=1, keepdims=True), axis=2)
        return (u, v)

    u, v = lax.fori_loop(0, num_iters, body, (u0, v0))
    return v, u


def eco_conv_init(key):
    M = MAX_CHANNELS
    k1, k2, k3, k4 = jax.random.split(key, 4)
    stdv = 1.0 / math.sqrt(M)
    random_conv_filter = stdv * jax.random.normal(k1, (M, M, 1), dtype=jnp.float32)
    bstdv = 1.0 / math.sqrt(OUT_CHANNELS)
    bias = jax.random.uniform(
        k2, (OUT_CHANNELS,), minval=-bstdv, maxval=bstdv, dtype=jnp.float32
    )

    # Skew-symmetric 1x1 filter (the [2,3] spatial flip is a no-op for 1x1 kernels).
    W = random_conv_filter[:, :, 0]
    A_b = (0.5 * (W - W.T))[None]  # (num=1, M, M)

    u0 = _l2_normalize(jax.random.normal(k3, (1, 1, M), dtype=jnp.float32), axis=2)
    v0 = _l2_normalize(jax.random.normal(k4, (1, M, 1), dtype=jnp.float32), axis=1)
    v_ret, u_ret = _fantastic_one_batch(A_b, u0, v0, INIT_ITERS)
    # __init__ does: u1, v1 = fantastic_one_batch(...); self.us = u1; self.vs = v1
    us, vs = v_ret, u_ret  # us: (1, M, 1), vs: (1, 1, M)
    return dict(random_conv_filter=random_conv_filter, bias=bias, us=us, vs=vs)


# -------------------- truncated matrix exponential (plain JAX, tiny) --------------------

def _expm_series(a):
    """I + sum_{i=1}^{EVAL_TERMS} A^i / i!  -- nine dependent 32x32 matmuls, ~0.6 MFLOP.

    Kept in plain JAX per perf review: a separate pallas_call costs more (launch + HBM
    roundtrip of a 4 KiB matrix) than the compute; multiplies by reciprocals.
    """
    curr = a
    acc = a
    for i in range(2, EVAL_TERMS + 1):
        curr = jnp.dot(curr, a, preferred_element_type=jnp.float32) * jnp.float32(1.0 / i)
        acc = acc + curr
    return acc + jnp.eye(a.shape[0], dtype=acc.dtype)


# ---------------------------------- Pallas conv kernel ----------------------------------

def _make_conv_kernel(b_tile):
    def kernel(w_ref, b_ref, x_ref, o_ref):
        # w_ref: (C_out, C_in) bf16 resident weight; b_ref: (C_out, 1) f32 resident bias;
        # x_ref: (b_tile, C_in, tile) bf16; o_ref: (b_tile, C_out, tile) bf16 lane-dense.
        w = w_ref[...]
        bias = b_ref[...]
        # Static unrolled loop over the folded batch images: each iteration is one
        # (C_out, C_in) x (C_in, tile) bf16 MXU matmul with f32 accumulation and a
        # lane-dense bf16 store.  All of this hides under the DMA (HBM-bound op), so
        # no further compute micro-optimization is warranted (per perf review).
        for i in range(b_tile):
            acc = jnp.dot(w, x_ref[i], preferred_element_type=jnp.float32)
            o_ref[i] = (acc + bias).astype(o_ref.dtype)
    return kernel


def _choose_tiling(B, HW):
    # Equal-sized, lane-dense spatial tiles (multiple of 128), as large as possible up
    # to TARGET_LANES lanes; the final partial tile (if any) is masked by Pallas, so no
    # activation padding copy is ever materialized.
    n_sp = pl.cdiv(HW, TARGET_LANES)
    tile = _round_up(pl.cdiv(HW, n_sp), 128)
    # Fold multiple batch images into one grid step for small feature maps so each step
    # still streams a large slab (amortizes the ~0.35 us per-step overhead).
    b_tile = max(1, min(B, MAX_BATCH_FOLD, TARGET_LANES // tile))
    # v7x megacore: if everything lands in one big grid step, split the spatial axis so
    # both TensorCores get work.  Skip tiny inputs where per-step overhead would grow.
    if pl.cdiv(B, b_tile) * pl.cdiv(HW, tile) == 1 and b_tile * tile >= 8192 and tile >= 256:
        tile = _round_up(pl.cdiv(HW, 2), 128)
    return b_tile, tile


def conv1x1_bias_nchw(x3, filt, bias):
    # x3: (B, C_in, HW) bf16 NCHW with spatial flattened; filt: (C_out, C_in) bf16;
    # bias: (C_out,) f32.
    B, C_in, HW = x3.shape
    C_out = filt.shape[0]
    b_tile, tile = _choose_tiling(B, HW)
    grid = (pl.cdiv(B, b_tile), pl.cdiv(HW, tile))
    b2 = bias.reshape(C_out, 1)
    cost = pl.CostEstimate(
        flops=2 * C_out * C_in * B * HW,
        bytes_accessed=(C_in + C_out) * B * HW * 2 + C_out * C_in * 2 + C_out * 4,
        transcendentals=0,
    )
    return pl.pallas_call(
        _make_conv_kernel(b_tile),
        out_shape=jax.ShapeDtypeStruct((B, C_out, HW), jnp.bfloat16),
        grid=grid,
        in_specs=[
            pl.BlockSpec((C_out, C_in), lambda b, t: (0, 0)),        # weight, resident
            pl.BlockSpec((C_out, 1), lambda b, t: (0, 0)),           # bias, resident
            pl.BlockSpec((b_tile, C_in, tile), lambda b, t: (b, 0, t)),
        ],
        out_specs=pl.BlockSpec((b_tile, C_out, tile), lambda b, t: (b, 0, t)),
        # Both grid axes are fully independent (no accumulation) -> parallel, so Mosaic
        # can shard them across TensorCores on multi-core chips (v7x).
        compiler_params=pltpu.CompilerParams(
            dimension_semantics=("parallel", "parallel"),
        ),
        cost_estimate=cost,
    )(filt, b2, x3)


# ------------------------------------- forward -------------------------------------

@jax.jit
def eco_conv_forward(params, x):
    W = params["random_conv_filter"][:, :, 0]
    A_b = (0.5 * (W - W.T))[None]  # (1, M, M)

    # eval mode: update_iters == 0 -> sigma uses the stored power-iteration vectors
    sigmas = jnp.sum(A_b * params["us"] * params["vs"], axis=(1, 2))  # (1,)
    a_n = (A_b / sigmas[:, None, None])[0]  # (M, M)

    # TODO(synk): PyTorch computes the series/conv in fp16 (.half()); TPU has no fp16
    # MXU path, so the series runs in f32 and the conv in bf16 (f32 accumulate) here.
    filt = _expm_series(a_n)  # (M, M) weight of the MxM 1x1 conv

    # PyTorch zero-pads x from IN to M channels before the MxM conv; using the
    # (OUT, IN) slice of the filter on the unpadded input is algebraically identical
    # and halves streamed input bytes (no padded copy of x ever hits HBM).
    filt_used = filt[:OUT_CHANNELS, :IN_CHANNELS].astype(jnp.bfloat16)

    B, C_in, H, Wd = x.shape
    x3 = x.reshape(B, C_in, H * Wd).astype(jnp.bfloat16)  # free reshape; stays NCHW
    z3 = conv1x1_bias_nchw(x3, filt_used, params["bias"])
    # Output kept in bf16 (write-dominated op: bf16 store halves output HBM traffic;
    # PyTorch's half-conv + f32 bias returns f32 -- cast downstream if strict dtype
    # parity is needed).
    return z3.reshape(B, OUT_CHANNELS, H, Wd)


if __name__ == "__main__":
    key = jax.random.PRNGKey(0)
    pkey, xkey = jax.random.split(key)
    params = eco_conv_init(pkey)
    x = jax.random.normal(xkey, (2, IN_CHANNELS, 16, 16), dtype=jnp.float32)

    z = eco_conv_forward(params, x)
    jax.block_until_ready(z)
    assert z.shape == (2, OUT_CHANNELS, 16, 16), z.shape

    # Silent sanity check against a plain-JAX reference of the same (bf16-input) math.
    Wf = params["random_conv_filter"][:, :, 0]
    A = 0.5 * (Wf - Wf.T)
    sigma = jnp.sum(A[None] * params["us"] * params["vs"], axis=(1, 2))[0]
    filt_ref = _expm_series(A / sigma)[:OUT_CHANNELS, :IN_CHANNELS].astype(jnp.bfloat16)
    ref = (
        jnp.einsum(
            "oc,bchw->bohw",
            filt_ref.astype(jnp.float32),
            x.astype(jnp.bfloat16).astype(jnp.float32),
            precision=lax.Precision.HIGHEST,
        )
        + params["bias"][None, :, None, None]
    )
    zf = z.astype(jnp.float32)
    assert bool(jnp.allclose(zf, ref, atol=5e-2, rtol=5e-2)), float(
        jnp.max(jnp.abs(zf - ref))
    )

    print("KERNEL_OK")
</pallas_src>

<mosaic_0001>
module attributes {stable_mosaic.version = 11 : i64} {
  func.func @kernel(%arg0: i32, %arg1: i32, %arg2: memref<32x16xbf16, #tpu.memory_space<vmem>>, %arg3: memref<32x1xf32, #tpu.memory_space<vmem>>, %arg4: memref<2x16x256xbf16, #tpu.memory_space<vmem>>, %arg5: memref<2x32x256xbf16, #tpu.memory_space<vmem>>) attributes {dimension_semantics = [#tpu.dimension_semantics<parallel>, #tpu.dimension_semantics<parallel>], iteration_bounds = array<i64: 1, 1>, scalar_prefetch = 0 : i64, scratch_operands = 0 : i64, tpu.core_type = #tpu.core_type<tc>, window_params = [{pipeline_mode = #tpu.pipeline_mode<synchronous>, transform_indices = @transform_0, window_bounds = array<i64: 32, 16>}, {pipeline_mode = #tpu.pipeline_mode<synchronous>, transform_indices = @transform_1, window_bounds = array<i64: 32, 1>}, {transform_indices = @transform_2, window_bounds = array<i64: 2, 16, 256>}, {transform_indices = @transform_3, window_bounds = array<i64: 2, 32, 256>}]} {
    %c0 = arith.constant 0 : index
    %c0_0 = arith.constant 0 : index
    %0 = vector.load %arg2[%c0, %c0_0] : memref<32x16xbf16, #tpu.memory_space<vmem>>, vector<32x16xbf16>
    %c0_1 = arith.constant 0 : index
    %c0_2 = arith.constant 0 : index
    %1 = vector.load %arg3[%c0_1, %c0_2] : memref<32x1xf32, #tpu.memory_space<vmem>>, vector<32x1xf32>
    %c0_3 = arith.constant 0 : index
    %c0_4 = arith.constant 0 : index
    %c0_5 = arith.constant 0 : index
    %2 = vector.load %arg4[%c0_3, %c0_4, %c0_5] : memref<2x16x256xbf16, #tpu.memory_space<vmem>>, vector<1x16x256xbf16>
    %3 = vector.shape_cast %2 : vector<1x16x256xbf16> to vector<16x256xbf16>
    %cst = arith.constant dense<0.000000e+00> : vector<32x256xf32>
    %4 = tpu.matmul %0, %3, %cst {dimension_numbers = #tpu.dot_dimension_numbers<[1], [0], [0], [1], [0, 0, 1, 1], [], []>} : vector<32x16xbf16>, vector<16x256xbf16>, vector<32x256xf32> -> vector<32x256xf32>
    %5 = vector.broadcast %1 : vector<32x1xf32> to vector<32x256xf32>
    %6 = arith.addf %4, %5 : vector<32x256xf32>
    %7 = arith.truncf %6 : vector<32x256xf32> to vector<32x256xbf16>
    %c0_6 = arith.constant 0 : index
    %c0_7 = arith.constant 0 : index
    %c0_8 = arith.constant 0 : index
    %8 = vector.load %arg5[%c0_6, %c0_7, %c0_8] : memref<2x32x256xbf16, #tpu.memory_space<vmem>>, vector<1x32x256xbf16>
    %9 = vector.shape_cast %8 : vector<1x32x256xbf16> to vector<32x256xbf16>
    %10 = vector.shape_cast %7 : vector<32x256xbf16> to vector<1x32x256xbf16>
    tpu.vector_store %arg5[%c0_6, %c0_7, %c0_8], %10 {strides = array<i32>} : memref<2x32x256xbf16, #tpu.memory_space<vmem>>, vector<1x32x256xbf16>,
    %c1 = arith.constant 1 : index
    %c0_9 = arith.constant 0 : index
    %c0_10 = arith.constant 0 : index
    %11 = vector.load %arg4[%c1, %c0_9, %c0_10] : memref<2x16x256xbf16, #tpu.memory_space<vmem>>, vector<1x16x256xbf16>
    %12 = vector.shape_cast %11 : vector<1x16x256xbf16> to vector<16x256xbf16>
    %cst_11 = arith.constant dense<0.000000e+00> : vector<32x256xf32>
    %13 = tpu.matmul %0, %12, %cst_11 {dimension_numbers = #tpu.dot_dimension_numbers<[1], [0], [0], [1], [0, 0, 1, 1], [], []>} : vector<32x16xbf16>, vector<16x256xbf16>, vector<32x256xf32> -> vector<32x256xf32>
    %14 = vector.broadcast %1 : vector<32x1xf32> to vector<32x256xf32>
    %15 = arith.addf %13, %14 : vector<32x256xf32>
    %16 = arith.truncf %15 : vector<32x256xf32> to vector<32x256xbf16>
    %c1_12 = arith.constant 1 : index
    %c0_13 = arith.constant 0 : index
    %c0_14 = arith.constant 0 : index
    %17 = vector.load %arg5[%c1_12, %c0_13, %c0_14] : memref<2x32x256xbf16, #tpu.memory_space<vmem>>, vector<1x32x256xbf16>
    %18 = vector.shape_cast %17 : vector<1x32x256xbf16> to vector<32x256xbf16>
    %19 = vector.shape_cast %16 : vector<32x256xbf16> to vector<1x32x256xbf16>
    tpu.vector_store %arg5[%c1_12, %c0_13, %c0_14], %19 {strides = array<i32>} : memref<2x32x256xbf16, #tpu.memory_space<vmem>>, vector<1x32x256xbf16>,
    return
  }
  func.func @transform_0(%arg0: i32, %arg1: i32) -> (i32, i32) {
    %c0_i32 = arith.constant 0 : i32
    %c0_i32_0 = arith.constant 0 : i32
    %c0_i32_1 = arith.constant 0 : i32
    return %c0_i32, %c0_i32_0 : i32, i32
  }
  func.func @transform_1(%arg0: i32, %arg1: i32) -> (i32, i32) {
    %c0_i32 = arith.constant 0 : i32
    %c0_i32_0 = arith.constant 0 : i32
    %c0_i32_1 = arith.constant 0 : i32
    return %c0_i32, %c0_i32_0 : i32, i32
  }
  func.func @transform_2(%arg0: i32, %arg1: i32) -> (i32, i32, i32) {
    %c0_i32 = arith.constant 0 : i32
    %c0_i32_0 = arith.constant 0 : i32
    return %arg0, %c0_i32, %arg1 : i32, i32, i32
  }
  func.func @transform_3(%arg0: i32, %arg1: i32) -> (i32, i32, i32) {
    %c0_i32 = arith.constant 0 : i32
    %c0_i32_0 = arith.constant 0 : i32
    return %arg0, %c0_i32, %arg1 : i32, i32, i32
  }
}

</mosaic_0001>

<llo_original>
// kernel: eco_conv_forward.1
$region0: #{eco_conv_forward.1}
  #allocation0 [shape = 'u32[]', space=smem, size = 0x4, offset = 0x4, fixed_abs, tag = 'smem constant byte address 0x4 - core index']
  #allocation1 [shape = 'u32[144,128]{1,0:T(1,128)}', space=vmem, size = 0x12000, scoped, tag = 'internal scratch']
  %s0 = inlined_call_operand.vmem [shape: bf16[32,16], index: 0, kind: input, shape index: {}]
  %s1 = inlined_call_operand.vmem [shape: f32[32,1], index: 1, kind: input, shape index: {}]
  %s2 = inlined_call_operand.vmem [shape: bf16[2,16,256], index: 2, kind: input, shape index: {}]
  %s3 = inlined_call_operand.vmem [shape: bf16[2,32,256], index: 3, kind: output, shape index: {}]
  %s4 = sld [smem:[#allocation0]]
  $region22: #{eco_conv_forward.1} parent=0
    _
  %s6 = ssub.s32 1, %s4
  %s7 = scalar_select 0, %s6, %s4
  // Predicated region
  $region2: #{eco_conv_forward.1} parent=0 // pred_check
    _
  $region3: #{eco_conv_forward.1} parent=0 // pred_check_branch
    %9 = sbr.rel (0) target = $region5
  $region4: #{eco_conv_forward.1} parent=0 // pred_region
    _
  $region5: #{eco_conv_forward.1} parent=0 // pred_fallthru
    _
  // Predicated region
  $region6: #{eco_conv_forward.1} parent=0 // pred_check
    _
  $region7: #{eco_conv_forward.1} parent=0 // pred_check_branch
    %11 = sbr.rel (0) target = $region9
  $region8: #{eco_conv_forward.1} parent=0 // pred_region
    _
  $region9: #{eco_conv_forward.1} parent=0 // pred_fallthru
    _
  // Predicated region
  $region10: #{eco_conv_forward.1} parent=0 // pred_check
    _
  $region11: #{eco_conv_forward.1} parent=0 // pred_check_branch
    %13 = sbr.rel (0) target = $region13
  $region12: #{eco_conv_forward.1} parent=0 // pred_region
    _
  $region13: #{eco_conv_forward.1} parent=0 // pred_fallthru
    _
  %v15 = vld [vmem:[%s0] sm:$0xf]
  %v16 = vld [vmem:[%s0 + $0x4] sm:$0xf]
  %v17 = vld [vmem:[%s0 + $0x8] sm:$0xf]
  %v18 = vld [vmem:[%s0 + $0xc] sm:$0xf]
  %v19 = vld [vmem:[%s1] sm:$0xff]
  %v20 = vld [vmem:[%s1 + $0x8] sm:$0xff]
  %v21 = vld [vmem:[%s1 + $0x10] sm:$0xff]
  %v22 = vld [vmem:[%s1 + $0x18] sm:$0xff]
  %v23 = vld [vmem:[%s2] sm:$0xff]
  %v24 = vld [vmem:[%s2 + $0x8] sm:$0xff]
  %26 = vset.pattern.permute.xlu0 0
  %27 = vperm.xlu0 %26, %v19
  %v28 = vpop.permute.xlu0 %27
  %31 = vset.pattern.permute.xlu0 0
  %32 = vperm.xlu0 %31, %v20
  %v33 = vpop.permute.xlu0 %32
  %36 = vset.pattern.permute.xlu0 0
  %37 = vperm.xlu0 %36, %v21
  %v38 = vpop.permute.xlu0 %37
  %41 = vset.pattern.permute.xlu0 0
  %42 = vperm.xlu0 %41, %v22
  %v43 = vpop.permute.xlu0 %42
  %v49 = vunpack.c.l.b16 %v15
  %v50 = vunpack.c.l.b16 %v16
  %v51 = vunpack.c.l.b16 %v17
  %v52 = vunpack.c.l.b16 %v18
  %v53 = vpack.c.b16 %v50, %v49
  %v54 = vpack.c.b16 %v52, %v51
  %v57 = vunpack.c.l.b16 %v23
  %v58 = vunpack.c.h.b16 %v23
  %v59 = vunpack.c.l.b16 %v24
  %v60 = vunpack.c.h.b16 %v24
  %v61 = vpack.c.b16 %v59, %v57
  %v62 = vpack.c.b16 %v60, %v58
  %vm65 = vcmask 130048
  %v67 = vsel %vm65, %v53, 0
  %v70 = vsel %vm65, %v54, 0
  %72 = vmatprep.subr.bf16.mxu0 %v62
  %73 = vmatpush1.bf16.msra.mxu0 %v61
  %74 = vmatprep.subr.bf16.mxu0 0
  %75 = vmatpush1.bf16.msra.mxu0 0
  %76 = vmatprep.subr.bf16.mxu0 0
  %77 = vmatpush1.bf16.msra.mxu0 0
  %78 = vmatprep.subr.bf16.mxu0 0
  %79 = vmatpush1.bf16.msra.mxu0 0
  %80 = vmatprep.subr.bf16.mxu0 0
  %81 = vmatpush1.bf16.msra.mxu0 0
  %82 = vmatprep.subr.bf16.mxu0 0
  %83 = vmatpush1.bf16.msra.mxu0 0
  %84 = vmatprep.subr.bf16.mxu0 0
  %85 = vmatpush1.bf16.msra.mxu0 0
  %86 = vmatprep.subr.bf16.mxu0 0
  %87 = vmatpush1.bf16.msra.mxu0 0
  %88 = vmatprep.subr.bf16.mxu0 0
  %89 = vmatpush1.bf16.msra.mxu0 0
  %90 = vmatprep.subr.bf16.mxu0 0
  %91 = vmatpush1.bf16.msra.mxu0 0
  %92 = vmatprep.subr.bf16.mxu0 0
  %93 = vmatpush1.bf16.msra.mxu0 0
  %94 = vmatprep.subr.bf16.mxu0 0
  %95 = vmatpush1.bf16.msra.mxu0 0
  %96 = vmatprep.subr.bf16.mxu0 0
  %97 = vmatpush1.bf16.msra.mxu0 0
  %98 = vmatprep.subr.bf16.mxu0 0
  %99 = vmatpush1.bf16.msra.mxu0 0
  %100 = vmatprep.subr.bf16.mxu0 0
  %101 = vmatpush1.bf16.msra.mxu0 0
  %102 = vmatprep.subr.bf16.mxu0 0
  %103 = vmatpush1.bf16.msra.mxu0 0
  %104 = vmatprep.mubr.bf16.mxu0 0
  %105 = vmatmul.mubr.bf16.gmra.mrb[0].mxu0 %v67
  %v106 = vpop.f32.mrb[0].mxu0
  %v107 = vadd.f32 %v28, %v106
  %v108 = vpop.f32.mrb[0].mxu0
  %v109 = vadd.f32 %v28, %v108
  %v110 = vpop.f32.mrb[0].mxu0
  %v111 = vadd.f32 %v33, %v110
  %v112 = vpop.f32.mrb[0].mxu0
  %v113 = vadd.f32 %v33, %v112
  %114 = vmatprep.mubr.bf16.mxu0 0
  %115 = vmatmul.mubr.bf16.gmra.mrb[0].mxu0 %v70
  %v116 = vpop.f32.mrb[0].mxu0
  %v117 = vadd.f32 %v38, %v116
  %v118 = vpop.f32.mrb[0].mxu0
  %v119 = vadd.f32 %v38, %v118
  %v120 = vpop.f32.mrb[0].mxu0
  %v121 = vadd.f32 %v43, %v120
  %v122 = vpop.f32.mrb[0].mxu0
  %v123 = vadd.f32 %v43, %v122
  %124 = vdwg.mxu0
  %v125 = vpack.c.bf16 %v111, %v107
  %v126 = vpack.c.bf16 %v113, %v109
  %v127 = vpack.c.bf16 %v121, %v117
  %v128 = vpack.c.bf16 %v123, %v119
  %v133 = vunpack.c.l.b16 %v125
  %v134 = vunpack.c.l.b16 %v126
  %v135 = vunpack.c.h.b16 %v125
  %v136 = vunpack.c.h.b16 %v126
  %v137 = vunpack.c.l.b16 %v127
  %v138 = vunpack.c.l.b16 %v128
  %v139 = vunpack.c.h.b16 %v127
  %v140 = vunpack.c.h.b16 %v128
  %v141 = vpack.c.b16 %v134, %v133
  %v142 = vpack.c.b16 %v136, %v135
  %v143 = vpack.c.b16 %v138, %v137
  %v144 = vpack.c.b16 %v140, %v139
  %149 = vst [vmem:[%s3] sm:$0xff] %v141
  %150 = vst [vmem:[%s3 + $0x8] sm:$0xff] %v142
  %151 = vst [vmem:[%s3 + $0x10] sm:$0xff] %v143
  %152 = vst [vmem:[%s3 + $0x18] sm:$0xff] %v144
  %s153 = scalar_lea.vmem %s2, 16
  %v154 = vld [vmem:[%s153] sm:$0xff]
  %v155 = vld [vmem:[%s153 + $0x8] sm:$0xff]
  %v158 = vunpack.c.l.b16 %v154
  %v159 = vunpack.c.h.b16 %v154
  %v160 = vunpack.c.l.b16 %v155
  %v161 = vunpack.c.h.b16 %v155
  %v162 = vpack.c.b16 %v160, %v158
  %v163 = vpack.c.b16 %v161, %v159
  %166 = vmatprep.subr.bf16.mxu0 %v163
  %167 = vmatpush1.bf16.msra.mxu0 %v162
  %168 = vmatprep.subr.bf16.mxu0 0
  %169 = vmatpush1.bf16.msra.mxu0 0
  %170 = vmatprep.subr.bf16.mxu0 0
  %171 = vmatpush1.bf16.msra.mxu0 0
  %172 = vmatprep.subr.bf16.mxu0 0
  %173 = vmatpush1.bf16.msra.mxu0 0
  %174 = vmatprep.subr.bf16.mxu0 0
  %175 = vmatpush1.bf16.msra.mxu0 0
  %176 = vmatprep.subr.bf16.mxu0 0
  %177 = vmatpush1.bf16.msra.mxu0 0
  %178 = vmatprep.subr.bf16.mxu0 0
  %179 = vmatpush1.bf16.msra.mxu0 0
  %180 = vmatprep.subr.bf16.mxu0 0
  %181 = vmatpush1.bf16.msra.mxu0 0
  %182 = vmatprep.subr.bf16.mxu0 0
  %183 = vmatpush1.bf16.msra.mxu0 0
  %184 = vmatprep.subr.bf16.mxu0 0
  %185 = vmatpush1.bf16.msra.mxu0 0
  %186 = vmatprep.subr.bf16.mxu0 0
  %187 = vmatpush1.bf16.msra.mxu0 0
  %188 = vmatprep.subr.bf16.mxu0 0
  %189 = vmatpush1.bf16.msra.mxu0 0
  %190 = vmatprep.subr.bf16.mxu0 0
  %191 = vmatpush1.bf16.msra.mxu0 0
  %192 = vmatprep.subr.bf16.mxu0 0
  %193 = vmatpush1.bf16.msra.mxu0 0
  %194 = vmatprep.subr.bf16.mxu0 0
  %195 = vmatpush1.bf16.msra.mxu0 0
  %196 = vmatprep.subr.bf16.mxu0 0
  %197 = vmatpush1.bf16.msra.mxu0 0
  %198 = vmatprep.mubr.bf16.mxu0 0
  %199 = vmatmul.mubr.bf16.gmra.mrb[0].mxu0 %v67
  %v200 = vpop.f32.mrb[0].mxu0
  %v201 = vadd.f32 %v28, %v200
  %v202 = vpop.f32.mrb[0].mxu0
  %v203 = vadd.f32 %v28, %v202
  %v204 = vpop.f32.mrb[0].mxu0
  %v205 = vadd.f32 %v33, %v204
  %v206 = vpop.f32.mrb[0].mxu0
  %v207 = vadd.f32 %v33, %v206
  %208 = vmatprep.mubr.bf16.mxu0 0
  %209 = vmatmul.mubr.bf16.gmra.mrb[0].mxu0 %v70
  %v210 = vpop.f32.mrb[0].mxu0
  %v211 = vadd.f32 %v38, %v210
  %v212 = vpop.f32.mrb[0].mxu0
  %v213 = vadd.f32 %v38, %v212
  %v214 = vpop.f32.mrb[0].mxu0
  %v215 = vadd.f32 %v43, %v214
  %v216 = vpop.f32.mrb[0].mxu0
  %v217 = vadd.f32 %v43, %v216
  %218 = vdwg.mxu0
  %v219 = vpack.c.bf16 %v205, %v201
  %v220 = vpack.c.bf16 %v207, %v203
  %v221 = vpack.c.bf16 %v215, %v211
  %v222 = vpack.c.bf16 %v217, %v213
  %v227 = vunpack.c.l.b16 %v219
  %v228 = vunpack.c.l.b16 %v220
  %v229 = vunpack.c.h.b16 %v219
  %v230 = vunpack.c.h.b16 %v220
  %v231 = vunpack.c.l.b16 %v221
  %v232 = vunpack.c.l.b16 %v222
  %v233 = vunpack.c.h.b16 %v221
  %v234 = vunpack.c.h.b16 %v222
  %v235 = vpack.c.b16 %v228, %v227
  %v236 = vpack.c.b16 %v230, %v229
  %v237 = vpack.c.b16 %v232, %v231
  %v238 = vpack.c.b16 %v234, %v233
  %s243 = scalar_lea.vmem %s3, 32
  %244 = vst [vmem:[%s243] sm:$0xff] %v235
  %245 = vst [vmem:[%s243 + $0x8] sm:$0xff] %v236
  %246 = vst [vmem:[%s243 + $0x10] sm:$0xff] %v237
  %247 = vst [vmem:[%s243 + $0x18] sm:$0xff] %v238
  // Predicated region
  $region14: #{eco_conv_forward.1} parent=0 // pred_check
    _
  $region15: #{eco_conv_forward.1} parent=0 // pred_check_branch
    %249 = sbr.rel (0) target = $region17
  $region16: #{eco_conv_forward.1} parent=0 // pred_region
    _
  $region17: #{eco_conv_forward.1} parent=0 // pred_fallthru
    _
  // Predicated region
  $region18: #{eco_conv_forward.1} parent=0 // pred_check
    _
  $region19: #{eco_conv_forward.1} parent=0 // pred_check_branch
    %251 = sbr.rel (0) target = $region21
  $region20: #{eco_conv_forward.1} parent=0 // pred_region
    _
  $region21: #{eco_conv_forward.1} parent=0 // pred_fallthru
    _

</llo_original>
